<compile_context>
chip_gen: v5e
topology: v5e:2x2
jax: 0.10.0
libtpu: 0.0.40
codegen_flags: <defaults>
</compile_context>

<pallas_src>
import jax
import jax.numpy as jnp
from jax import lax
from jax.experimental import pallas as pl
from jax.experimental.pallas import tpu as pltpu


# ----------------------------------------------------------------------------
# Fused TemporalBlock kernel (one grid step == one batch element)
# ----------------------------------------------------------------------------
def make_block_kernel(*, K, T, pad_left, upsample):
    f32 = jnp.float32
    bf16 = jnp.bfloat16

    def mxu(a, w):  # bf16 operands, f32 accumulation on the MXU
        return jnp.dot(a.astype(bf16), w, preferred_element_type=f32)

    def shift_rows(y, s):
        # Rows of y shifted down by s (zero-filled); s is a static Python int.
        # Shift-after-matmul == shift-before-matmul for row-wise matmuls, so we always
        # roll the f32 result (avoids packed-bf16 sublane rolls).
        if s == 0:
            return y
        rolled = pltpu.roll(y, shift=s % T, axis=0)
        rows = lax.broadcasted_iota(jnp.int32, y.shape, 0)
        valid = (rows >= s) & (rows < T + s)
        return jnp.where(valid, rolled, jnp.zeros_like(rolled))

    def kernel(xs_ref, xu_ref, tb_ref, w1s_ref, w1u_ref, wrs_ref, wru_ref,
               w2_ref, b2_ref, o_ref):
        xs = xs_ref[0]                                   # (T, Cs) bf16
        xu = xu_ref[0]                                   # (T, Cu) bf16

        # ---- conv1 (K taps, skip/up halves) + [time-embed proj + b1] + ReLU ----
        h = tb_ref[0]                                    # (1, H) f32, broadcast over T
        for k in range(K):                               # static unroll
            s = pad_left - k
            h = h + shift_rows(mxu(xs, w1s_ref[k]) + mxu(xu, w1u_ref[k]), s)
        h = jnp.maximum(h, 0.0)                          # (T, H) f32

        # ---- 1x1 residual projection (split over skip/up), b2+br folded bias ----
        out = b2_ref[...] + mxu(xs, wrs_ref[...]) + mxu(xu, wru_ref[...])

        # ---- conv2 (K taps) on h, shifts in-register (no VMEM halo), + res + ReLU ----
        for k in range(K):
            s = pad_left - k
            out = out + shift_rows(mxu(h, w2_ref[k]), s)
        out = jnp.maximum(out, 0.0)                      # (T, Cout) f32

        if upsample:
            # x2 linear upsample (align_corners=False), exact f32 on the VPU/XLU:
            #   even[t] = 0.25*out[t-1] + 0.75*out[t]   (edge-clamped)
            #   odd[t]  = 0.75*out[t]   + 0.25*out[t+1] (edge-clamped)
            rows = lax.broadcasted_iota(jnp.int32, out.shape, 0)
            left = jnp.where(rows == 0, out, pltpu.roll(out, shift=1, axis=0))
            right = jnp.where(rows == T - 1, out, pltpu.roll(out, shift=T - 1, axis=0))
            C = out.shape[-1]
            # Store rows as [even | odd] lanes; wrapper reshape to (2T, C) is a free bitcast.
            o_ref[0, :, pl.ds(0, C)] = (0.25 * left + 0.75 * out).astype(o_ref.dtype)
            o_ref[0, :, pl.ds(C, C)] = (0.75 * out + 0.25 * right).astype(o_ref.dtype)
        else:
            o_ref[0] = out.astype(o_ref.dtype)

    return kernel


def pallas_temporal_block(skip, up, time_embed, p, *, is_causal, last_block):
    """skip: (B, T, Cs), up: (B, T, Cu) channels-last; time_embed: (B, E).

    Returns (B, T, Cout) f32 for the last block, else (B, 2T, Cout) bf16 (x2 upsampled).
    """
    B, T, Cs = skip.shape
    Cu = up.shape[-1]
    K, Cin, H = p["w1"].shape
    assert Cin == Cs + Cu
    Cout = p["w2"].shape[2]
    pad_left = K - 1 if is_causal else (K - 1) // 2
    bf16 = jnp.bfloat16

    # Hoisted time-embed projection + folded conv1 bias: one (B,E)@(E,H) XLA matmul.
    t_bias = (jnp.dot(time_embed.astype(bf16), p["wt"][0].astype(bf16),
                      preferred_element_type=jnp.float32)
              + p["bt"] + p["b1"])[:, None, :]                     # (B, 1, H) f32

    # Split weights along Cin so the skip concat never materializes; pre-cast to bf16.
    w1s = p["w1"][:, :Cs].astype(bf16)                              # (K, Cs, H)
    w1u = p["w1"][:, Cs:].astype(bf16)                              # (K, Cu, H)
    wrs = p["wr"][0, :Cs].astype(bf16)                              # (Cs, Cout)
    wru = p["wr"][0, Cs:].astype(bf16)                              # (Cu, Cout)
    w2 = p["w2"].astype(bf16)                                       # (K, H, Cout)
    bias2 = (p["b2"] + p["br"]).reshape(1, Cout)                    # f32, folded b2+br

    if last_block:
        out_shape = jax.ShapeDtypeStruct((B, T, Cout), jnp.float32)
        out_spec = pl.BlockSpec((1, T, Cout), lambda i: (i, 0, 0))
    else:
        # bf16 inter-block activations; rows laid out as [even | odd] along lanes.
        out_shape = jax.ShapeDtypeStruct((B, T, 2 * Cout), bf16)
        out_spec = pl.BlockSpec((1, T, 2 * Cout), lambda i: (i, 0, 0))

    out = pl.pallas_call(
        make_block_kernel(K=K, T=T, pad_left=pad_left, upsample=not last_block),
        out_shape=out_shape,
        grid=(B,),
        in_specs=[
            pl.BlockSpec((1, T, Cs), lambda i: (i, 0, 0)),
            pl.BlockSpec((1, T, Cu), lambda i: (i, 0, 0)),
            pl.BlockSpec((1, 1, H), lambda i: (i, 0, 0)),
            pl.BlockSpec((K, Cs, H), lambda i: (0, 0, 0)),
            pl.BlockSpec((K, Cu, H), lambda i: (0, 0, 0)),
            pl.BlockSpec((Cs, Cout), lambda i: (0, 0)),
            pl.BlockSpec((Cu, Cout), lambda i: (0, 0)),
            pl.BlockSpec((K, H, Cout), lambda i: (0, 0, 0)),
            pl.BlockSpec((1, Cout), lambda i: (0, 0)),
        ],
        out_specs=out_spec,
        compiler_params=pltpu.CompilerParams(dimension_semantics=("parallel",)),
    )(skip, up, t_bias, w1s, w1u, wrs, wru, w2, bias2)

    if not last_block:
        # (B, T, 2*Cout) with [even|odd] lanes -> (B, 2T, Cout) interleaved in time.
        # Row-major layouts are identical, so this reshape is a no-copy bitcast in XLA.
        out = out.reshape(B, 2 * T, Cout)
    return out


# ----------------------------------------------------------------------------
# Pure-JAX reference block (same bf16-operand / f32-accumulation / bf16-activation math)
# ----------------------------------------------------------------------------
def ref_temporal_block(skip, up, time_embed, p, *, is_causal, last_block):
    bf16 = jnp.bfloat16
    x = jnp.concatenate([skip, up], axis=-1)
    K = p["w1"].shape[0]
    pad_left = K - 1 if is_causal else (K - 1) // 2
    pad = (pad_left, K - 1 - pad_left)

    def conv(xx, w, b):
        B, T, _ = xx.shape
        xp = jnp.pad(xx, ((0, 0), pad, (0, 0)))
        acc = sum(jnp.einsum("btc,cd->btd", xp[:, k:k + T].astype(bf16),
                             w[k].astype(bf16), preferred_element_type=jnp.float32)
                  for k in range(K))
        return acc + b

    t_add = jnp.einsum("be,eh->bh", time_embed.astype(bf16), p["wt"][0].astype(bf16),
                       preferred_element_type=jnp.float32) + p["bt"]
    h = jnp.maximum(conv(x, p["w1"], p["b1"]) + t_add[:, None, :], 0.0)
    res = jnp.einsum("btc,cd->btd", x.astype(bf16), p["wr"][0].astype(bf16),
                     preferred_element_type=jnp.float32) + p["br"]
    out = jnp.maximum(conv(h, p["w2"], p["b2"]) + res, 0.0)
    if not last_block:
        left = jnp.concatenate([out[:, :1], out[:, :-1]], axis=1)
        right = jnp.concatenate([out[:, 1:], out[:, -1:]], axis=1)
        even = 0.25 * left + 0.75 * out
        odd = 0.75 * out + 0.25 * right
        B, T, C = out.shape
        out = jnp.stack([even, odd], axis=2).reshape(B, 2 * T, C).astype(bf16)
    return out


# ----------------------------------------------------------------------------
# TcnDecoder
# ----------------------------------------------------------------------------
def tcn_decoder(x_nct, time_embed, down_skip_nct, params, *, is_causal, block_fn):
    """x_nct: (B, C, T); time_embed: (B, E); down_skip_nct: list of (B, c, t) popped deepest-first."""
    # NCT <-> channels-last transposes only at the public boundary; the whole decoder
    # runs channels-last (channels on TPU lanes) in bf16 inter-block activations.
    bf16 = jnp.bfloat16
    up = jnp.transpose(x_nct, (0, 2, 1)).astype(bf16)
    skips = [jnp.transpose(s, (0, 2, 1)).astype(bf16) for s in down_skip_nct]
    for p in params["up"]:
        up = block_fn(skips.pop(), up, time_embed, p,
                      is_causal=is_causal, last_block=False)
    up = block_fn(skips.pop(), up, time_embed, params["out"],
                  is_causal=is_causal, last_block=True)
    return jnp.transpose(up, (0, 2, 1))


def init_block_params(key, n_in, n_hidden, n_out, time_embed_dim, kernel_size):
    ks = jax.random.split(key, 8)
    w = lambda k, s: jax.random.normal(k, s, jnp.float32) * 0.1
    return dict(
        w1=w(ks[0], (kernel_size, n_in, n_hidden)), b1=w(ks[1], (n_hidden,)),
        wt=w(ks[2], (1, time_embed_dim, n_hidden)), bt=w(ks[3], (n_hidden,)),
        w2=w(ks[4], (kernel_size, n_hidden, n_out)), b2=w(ks[5], (n_out,)),
        wr=w(ks[6], (1, n_in, n_out)),              br=w(ks[7], (n_out,)),
    )


if __name__ == "__main__":
    key = jax.random.PRNGKey(0)
    channels = [8, 16, 32]        # decoder channels (incl. output channels), as in __init__
    time_embed_dim = 16
    kernel_size = 3
    B, T = 2, 8
    rev = list(reversed(channels))  # [32, 16, 8]

    k_params, k_x, k_t, k_s0, k_s1 = jax.random.split(key, 5)
    kp = jax.random.split(k_params, len(rev) - 1)
    up_params = []
    for i in range(1, len(rev) - 1):
        up_params.append(init_block_params(
            kp[i - 1], 2 * rev[i - 1], rev[i - 1], rev[i], time_embed_dim, kernel_size))
    out_params = init_block_params(
        kp[-1], 2 * rev[-2], rev[-2], rev[-1], time_embed_dim, kernel_size)
    params = dict(up=up_params, out=out_params)

    # Inputs (PyTorch-style NCT): x at the bottleneck, skips popped deepest-first.
    x = jax.random.normal(k_x, (B, rev[0], T), jnp.float32)                 # (b, j*d, t)
    time_embed = jax.random.normal(k_t, (B, time_embed_dim), jnp.float32)   # (b, e)
    down_skip = [
        jax.random.normal(k_s1, (B, rev[1], 2 * T), jnp.float32),  # consumed by `out` block
        jax.random.normal(k_s0, (B, rev[0], T), jnp.float32),      # consumed by first `up` block
    ]

    out = tcn_decoder(x, time_embed, list(down_skip), params,
                      is_causal=True, block_fn=pallas_temporal_block)
    out = jax.block_until_ready(out)

    ref = tcn_decoder(x, time_embed, list(down_skip), params,
                      is_causal=True, block_fn=ref_temporal_block)
    assert out.shape == (B, rev[-1], 2 * T), out.shape
    assert jnp.allclose(out, ref, atol=1e-2, rtol=1e-2), float(jnp.max(jnp.abs(out - ref)))
    print("KERNEL_OK")
</pallas_src>

<mosaic_0001>
module attributes {stable_mosaic.version = 11 : i64} {
  func.func @kernel(%arg0: i32, %arg1: memref<1x8x32xbf16, #tpu.memory_space<vmem>>, %arg2: memref<1x8x32xbf16, #tpu.memory_space<vmem>>, %arg3: memref<1x1x32xf32, #tpu.memory_space<vmem>>, %arg4: memref<3x32x32xbf16, #tpu.memory_space<vmem>>, %arg5: memref<3x32x32xbf16, #tpu.memory_space<vmem>>, %arg6: memref<32x16xbf16, #tpu.memory_space<vmem>>, %arg7: memref<32x16xbf16, #tpu.memory_space<vmem>>, %arg8: memref<3x32x16xbf16, #tpu.memory_space<vmem>>, %arg9: memref<1x16xf32, #tpu.memory_space<vmem>>, %arg10: memref<1x8x32xbf16, #tpu.memory_space<vmem>>) attributes {dimension_semantics = [#tpu.dimension_semantics<parallel>], iteration_bounds = array<i64: 2>, scalar_prefetch = 0 : i64, scratch_operands = 0 : i64, tpu.core_type = #tpu.core_type<tc>, window_params = [{transform_indices = @transform_0, window_bounds = array<i64: 1, 8, 32>}, {transform_indices = @transform_1, window_bounds = array<i64: 1, 8, 32>}, {transform_indices = @transform_2, window_bounds = array<i64: 1, 1, 32>}, {pipeline_mode = #tpu.pipeline_mode<synchronous>, transform_indices = @transform_3, window_bounds = array<i64: 3, 32, 32>}, {pipeline_mode = #tpu.pipeline_mode<synchronous>, transform_indices = @transform_4, window_bounds = array<i64: 3, 32, 32>}, {pipeline_mode = #tpu.pipeline_mode<synchronous>, transform_indices = @transform_5, window_bounds = array<i64: 32, 16>}, {pipeline_mode = #tpu.pipeline_mode<synchronous>, transform_indices = @transform_6, window_bounds = array<i64: 32, 16>}, {pipeline_mode = #tpu.pipeline_mode<synchronous>, transform_indices = @transform_7, window_bounds = array<i64: 3, 32, 16>}, {pipeline_mode = #tpu.pipeline_mode<synchronous>, transform_indices = @transform_8, window_bounds = array<i64: 1, 16>}, {transform_indices = @transform_9, window_bounds = array<i64: 1, 8, 32>}]} {
    %c0 = arith.constant 0 : index
    %c0_0 = arith.constant 0 : index
    %c0_1 = arith.constant 0 : index
    %0 = vector.load %arg1[%c0, %c0_0, %c0_1] : memref<1x8x32xbf16, #tpu.memory_space<vmem>>, vector<1x8x32xbf16>
    %1 = vector.shape_cast %0 : vector<1x8x32xbf16> to vector<8x32xbf16>
    %c0_2 = arith.constant 0 : index
    %c0_3 = arith.constant 0 : index
    %c0_4 = arith.constant 0 : index
    %2 = vector.load %arg2[%c0_2, %c0_3, %c0_4] : memref<1x8x32xbf16, #tpu.memory_space<vmem>>, vector<1x8x32xbf16>
    %3 = vector.shape_cast %2 : vector<1x8x32xbf16> to vector<8x32xbf16>
    %c0_5 = arith.constant 0 : index
    %c0_6 = arith.constant 0 : index
    %c0_7 = arith.constant 0 : index
    %4 = vector.load %arg3[%c0_5, %c0_6, %c0_7] : memref<1x1x32xf32, #tpu.memory_space<vmem>>, vector<1x1x32xf32>
    %5 = vector.shape_cast %4 : vector<1x1x32xf32> to vector<1x32xf32>
    %c0_8 = arith.constant 0 : index
    %c0_9 = arith.constant 0 : index
    %c0_10 = arith.constant 0 : index
    %6 = vector.load %arg4[%c0_8, %c0_9, %c0_10] : memref<3x32x32xbf16, #tpu.memory_space<vmem>>, vector<1x32x32xbf16>
    %7 = vector.shape_cast %6 : vector<1x32x32xbf16> to vector<32x32xbf16>
    %cst = arith.constant dense<0.000000e+00> : vector<8x32xf32>
    %8 = tpu.matmul %1, %7, %cst {dimension_numbers = #tpu.dot_dimension_numbers<[1], [0], [0], [1], [0, 0, 1, 1], [], []>} : vector<8x32xbf16>, vector<32x32xbf16>, vector<8x32xf32> -> vector<8x32xf32>
    %c0_11 = arith.constant 0 : index
    %c0_12 = arith.constant 0 : index
    %c0_13 = arith.constant 0 : index
    %9 = vector.load %arg5[%c0_11, %c0_12, %c0_13] : memref<3x32x32xbf16, #tpu.memory_space<vmem>>, vector<1x32x32xbf16>
    %10 = vector.shape_cast %9 : vector<1x32x32xbf16> to vector<32x32xbf16>
    %cst_14 = arith.constant dense<0.000000e+00> : vector<8x32xf32>
    %11 = tpu.matmul %3, %10, %cst_14 {dimension_numbers = #tpu.dot_dimension_numbers<[1], [0], [0], [1], [0, 0, 1, 1], [], []>} : vector<8x32xbf16>, vector<32x32xbf16>, vector<8x32xf32> -> vector<8x32xf32>
    %12 = arith.addf %8, %11 : vector<8x32xf32>
    %c2_i32 = arith.constant 2 : i32
    %13 = tpu.dynamic_rotate %12 by %c2_i32 dim 0 : vector<8x32xf32>, i32 -> vector<8x32xf32>
    %14 = tpu.iota {dimensions = array<i32: 0>} : vector<8x32xi32>
    %c2_i32_15 = arith.constant 2 : i32
    %15 = vector.broadcast %c2_i32_15 : i32 to vector<8x32xi32>
    %16 = arith.cmpi sge, %14, %15 : vector<8x32xi32>
    %c10_i32 = arith.constant 10 : i32
    %17 = vector.broadcast %c10_i32 : i32 to vector<8x32xi32>
    %18 = arith.cmpi slt, %14, %17 : vector<8x32xi32>
    %19 = arith.andi %16, %18 : vector<8x32xi1>
    %cst_16 = arith.constant 0.000000e+00 : f32
    %20 = vector.broadcast %cst_16 : f32 to vector<8x32xf32>
    %21 = arith.select %19, %13, %20 : vector<8x32xi1>, vector<8x32xf32>
    %22 = vector.broadcast %5 : vector<1x32xf32> to vector<8x32xf32>
    %23 = arith.addf %22, %21 : vector<8x32xf32>
    %c1 = arith.constant 1 : index
    %c0_17 = arith.constant 0 : index
    %c0_18 = arith.constant 0 : index
    %24 = vector.load %arg4[%c1, %c0_17, %c0_18] : memref<3x32x32xbf16, #tpu.memory_space<vmem>>, vector<1x32x32xbf16>
    %25 = vector.shape_cast %24 : vector<1x32x32xbf16> to vector<32x32xbf16>
    %cst_19 = arith.constant dense<0.000000e+00> : vector<8x32xf32>
    %26 = tpu.matmul %1, %25, %cst_19 {dimension_numbers = #tpu.dot_dimension_numbers<[1], [0], [0], [1], [0, 0, 1, 1], [], []>} : vector<8x32xbf16>, vector<32x32xbf16>, vector<8x32xf32> -> vector<8x32xf32>
    %c1_20 = arith.constant 1 : index
    %c0_21 = arith.constant 0 : index
    %c0_22 = arith.constant 0 : index
    %27 = vector.load %arg5[%c1_20, %c0_21, %c0_22] : memref<3x32x32xbf16, #tpu.memory_space<vmem>>, vector<1x32x32xbf16>
    %28 = vector.shape_cast %27 : vector<1x32x32xbf16> to vector<32x32xbf16>
    %cst_23 = arith.constant dense<0.000000e+00> : vector<8x32xf32>
    %29 = tpu.matmul %3, %28, %cst_23 {dimension_numbers = #tpu.dot_dimension_numbers<[1], [0], [0], [1], [0, 0, 1, 1], [], []>} : vector<8x32xbf16>, vector<32x32xbf16>, vector<8x32xf32> -> vector<8x32xf32>
    %30 = arith.addf %26, %29 : vector<8x32xf32>
    %c1_i32 = arith.constant 1 : i32
    %31 = tpu.dynamic_rotate %30 by %c1_i32 dim 0 : vector<8x32xf32>, i32 -> vector<8x32xf32>
    %32 = tpu.iota {dimensions = array<i32: 0>} : vector<8x32xi32>
    %c1_i32_24 = arith.constant 1 : i32
    %33 = vector.broadcast %c1_i32_24 : i32 to vector<8x32xi32>
    %34 = arith.cmpi sge, %32, %33 : vector<8x32xi32>
    %c9_i32 = arith.constant 9 : i32
    %35 = vector.broadcast %c9_i32 : i32 to vector<8x32xi32>
    %36 = arith.cmpi slt, %32, %35 : vector<8x32xi32>
    %37 = arith.andi %34, %36 : vector<8x32xi1>
    %cst_25 = arith.constant 0.000000e+00 : f32
    %38 = vector.broadcast %cst_25 : f32 to vector<8x32xf32>
    %39 = arith.select %37, %31, %38 : vector<8x32xi1>, vector<8x32xf32>
    %40 = arith.addf %23, %39 : vector<8x32xf32>
    %c2 = arith.constant 2 : index
    %c0_26 = arith.constant 0 : index
    %c0_27 = arith.constant 0 : index
    %41 = vector.load %arg4[%c2, %c0_26, %c0_27] : memref<3x32x32xbf16, #tpu.memory_space<vmem>>, vector<1x32x32xbf16>
    %42 = vector.shape_cast %41 : vector<1x32x32xbf16> to vector<32x32xbf16>
    %cst_28 = arith.constant dense<0.000000e+00> : vector<8x32xf32>
    %43 = tpu.matmul %1, %42, %cst_28 {dimension_numbers = #tpu.dot_dimension_numbers<[1], [0], [0], [1], [0, 0, 1, 1], [], []>} : vector<8x32xbf16>, vector<32x32xbf16>, vector<8x32xf32> -> vector<8x32xf32>
    %c2_29 = arith.constant 2 : index
    %c0_30 = arith.constant 0 : index
    %c0_31 = arith.constant 0 : index
    %44 = vector.load %arg5[%c2_29, %c0_30, %c0_31] : memref<3x32x32xbf16, #tpu.memory_space<vmem>>, vector<1x32x32xbf16>
    %45 = vector.shape_cast %44 : vector<1x32x32xbf16> to vector<32x32xbf16>
    %cst_32 = arith.constant dense<0.000000e+00> : vector<8x32xf32>
    %46 = tpu.matmul %3, %45, %cst_32 {dimension_numbers = #tpu.dot_dimension_numbers<[1], [0], [0], [1], [0, 0, 1, 1], [], []>} : vector<8x32xbf16>, vector<32x32xbf16>, vector<8x32xf32> -> vector<8x32xf32>
    %47 = arith.addf %43, %46 : vector<8x32xf32>
    %48 = arith.addf %40, %47 : vector<8x32xf32>
    %cst_33 = arith.constant 0.000000e+00 : f32
    %49 = vector.broadcast %cst_33 : f32 to vector<8x32xf32>
    %50 = arith.maximumf %48, %49 : vector<8x32xf32>
    %c0_34 = arith.constant 0 : index
    %c0_35 = arith.constant 0 : index
    %51 = vector.load %arg9[%c0_34, %c0_35] : memref<1x16xf32, #tpu.memory_space<vmem>>, vector<1x16xf32>
    %c0_36 = arith.constant 0 : index
    %c0_37 = arith.constant 0 : index
    %52 = vector.load %arg6[%c0_36, %c0_37] : memref<32x16xbf16, #tpu.memory_space<vmem>>, vector<32x16xbf16>
    %cst_38 = arith.constant dense<0.000000e+00> : vector<8x16xf32>
    %53 = tpu.matmul %1, %52, %cst_38 {dimension_numbers = #tpu.dot_dimension_numbers<[1], [0], [0], [1], [0, 0, 1, 1], [], []>} : vector<8x32xbf16>, vector<32x16xbf16>, vector<8x16xf32> -> vector<8x16xf32>
    %54 = vector.broadcast %51 : vector<1x16xf32> to vector<8x16xf32>
    %55 = arith.addf %54, %53 : vector<8x16xf32>
    %c0_39 = arith.constant 0 : index
    %c0_40 = arith.constant 0 : index
    %56 = vector.load %arg7[%c0_39, %c0_40] : memref<32x16xbf16, #tpu.memory_space<vmem>>, vector<32x16xbf16>
    %cst_41 = arith.constant dense<0.000000e+00> : vector<8x16xf32>
    %57 = tpu.matmul %3, %56, %cst_41 {dimension_numbers = #tpu.dot_dimension_numbers<[1], [0], [0], [1], [0, 0, 1, 1], [], []>} : vector<8x32xbf16>, vector<32x16xbf16>, vector<8x16xf32> -> vector<8x16xf32>
    %58 = arith.addf %55, %57 : vector<8x16xf32>
    %c0_42 = arith.constant 0 : index
    %c0_43 = arith.constant 0 : index
    %c0_44 = arith.constant 0 : index
    %59 = vector.load %arg8[%c0_42, %c0_43, %c0_44] : memref<3x32x16xbf16, #tpu.memory_space<vmem>>, vector<1x32x16xbf16>
    %60 = vector.shape_cast %59 : vector<1x32x16xbf16> to vector<32x16xbf16>
    %61 = arith.truncf %50 : vector<8x32xf32> to vector<8x32xbf16>
    %cst_45 = arith.constant dense<0.000000e+00> : vector<8x16xf32>
    %62 = tpu.matmul %61, %60, %cst_45 {dimension_numbers = #tpu.dot_dimension_numbers<[1], [0], [0], [1], [0, 0, 1, 1], [], []>} : vector<8x32xbf16>, vector<32x16xbf16>, vector<8x16xf32> -> vector<8x16xf32>
    %c2_i32_46 = arith.constant 2 : i32
    %63 = tpu.dynamic_rotate %62 by %c2_i32_46 dim 0 : vector<8x16xf32>, i32 -> vector<8x16xf32>
    %64 = tpu.iota {dimensions = array<i32: 0>} : vector<8x16xi32>
    %c2_i32_47 = arith.constant 2 : i32
    %65 = vector.broadcast %c2_i32_47 : i32 to vector<8x16xi32>
    %66 = arith.cmpi sge, %64, %65 : vector<8x16xi32>
    %c10_i32_48 = arith.constant 10 : i32
    %67 = vector.broadcast %c10_i32_48 : i32 to vector<8x16xi32>
    %68 = arith.cmpi slt, %64, %67 : vector<8x16xi32>
    %69 = arith.andi %66, %68 : vector<8x16xi1>
    %cst_49 = arith.constant 0.000000e+00 : f32
    %70 = vector.broadcast %cst_49 : f32 to vector<8x16xf32>
    %71 = arith.select %69, %63, %70 : vector<8x16xi1>, vector<8x16xf32>
    %72 = arith.addf %58, %71 : vector<8x16xf32>
    %c1_50 = arith.constant 1 : index
    %c0_51 = arith.constant 0 : index
    %c0_52 = arith.constant 0 : index
    %73 = vector.load %arg8[%c1_50, %c0_51, %c0_52] : memref<3x32x16xbf16, #tpu.memory_space<vmem>>, vector<1x32x16xbf16>
    %74 = vector.shape_cast %73 : vector<1x32x16xbf16> to vector<32x16xbf16>
    %75 = arith.truncf %50 : vector<8x32xf32> to vector<8x32xbf16>
    %cst_53 = arith.constant dense<0.000000e+00> : vector<8x16xf32>
    %76 = tpu.matmul %75, %74, %cst_53 {dimension_numbers = #tpu.dot_dimension_numbers<[1], [0], [0], [1], [0, 0, 1, 1], [], []>} : vector<8x32xbf16>, vector<32x16xbf16>, vector<8x16xf32> -> vector<8x16xf32>
    %c1_i32_54 = arith.constant 1 : i32
    %77 = tpu.dynamic_rotate %76 by %c1_i32_54 dim 0 : vector<8x16xf32>, i32 -> vector<8x16xf32>
    %78 = tpu.iota {dimensions = array<i32: 0>} : vector<8x16xi32>
    %c1_i32_55 = arith.constant 1 : i32
    %79 = vector.broadcast %c1_i32_55 : i32 to vector<8x16xi32>
    %80 = arith.cmpi sge, %78, %79 : vector<8x16xi32>
    %c9_i32_56 = arith.constant 9 : i32
    %81 = vector.broadcast %c9_i32_56 : i32 to vector<8x16xi32>
    %82 = arith.cmpi slt, %78, %81 : vector<8x16xi32>
    %83 = arith.andi %80, %82 : vector<8x16xi1>
    %cst_57 = arith.constant 0.000000e+00 : f32
    %84 = vector.broadcast %cst_57 : f32 to vector<8x16xf32>
    %85 = arith.select %83, %77, %84 : vector<8x16xi1>, vector<8x16xf32>
    %86 = arith.addf %72, %85 : vector<8x16xf32>
    %c2_58 = arith.constant 2 : index
    %c0_59 = arith.constant 0 : index
    %c0_60 = arith.constant 0 : index
    %87 = vector.load %arg8[%c2_58, %c0_59, %c0_60] : memref<3x32x16xbf16, #tpu.memory_space<vmem>>, vector<1x32x16xbf16>
    %88 = vector.shape_cast %87 : vector<1x32x16xbf16> to vector<32x16xbf16>
    %89 = arith.truncf %50 : vector<8x32xf32> to vector<8x32xbf16>
    %cst_61 = arith.constant dense<0.000000e+00> : vector<8x16xf32>
    %90 = tpu.matmul %89, %88, %cst_61 {dimension_numbers = #tpu.dot_dimension_numbers<[1], [0], [0], [1], [0, 0, 1, 1], [], []>} : vector<8x32xbf16>, vector<32x16xbf16>, vector<8x16xf32> -> vector<8x16xf32>
    %91 = arith.addf %86, %90 : vector<8x16xf32>
    %cst_62 = arith.constant 0.000000e+00 : f32
    %92 = vector.broadcast %cst_62 : f32 to vector<8x16xf32>
    %93 = arith.maximumf %91, %92 : vector<8x16xf32>
    %94 = tpu.iota {dimensions = array<i32: 0>} : vector<8x16xi32>
    %c0_i32 = arith.constant 0 : i32
    %95 = vector.broadcast %c0_i32 : i32 to vector<8x16xi32>
    %96 = arith.cmpi eq, %94, %95 : vector<8x16xi32>
    %c1_i32_63 = arith.constant 1 : i32
    %97 = tpu.dynamic_rotate %93 by %c1_i32_63 dim 0 : vector<8x16xf32>, i32 -> vector<8x16xf32>
    %98 = arith.select %96, %93, %97 : vector<8x16xi1>, vector<8x16xf32>
    %c7_i32 = arith.constant 7 : i32
    %99 = vector.broadcast %c7_i32 : i32 to vector<8x16xi32>
    %100 = arith.cmpi eq, %94, %99 : vector<8x16xi32>
    %c7_i32_64 = arith.constant 7 : i32
    %101 = tpu.dynamic_rotate %93 by %c7_i32_64 dim 0 : vector<8x16xf32>, i32 -> vector<8x16xf32>
    %102 = arith.select %100, %93, %101 : vector<8x16xi1>, vector<8x16xf32>
    %cst_65 = arith.constant 2.500000e-01 : f32
    %103 = vector.broadcast %cst_65 : f32 to vector<8x16xf32>
    %104 = arith.mulf %103, %98 : vector<8x16xf32>
    %cst_66 = arith.constant 7.500000e-01 : f32
    %105 = vector.broadcast %cst_66 : f32 to vector<8x16xf32>
    %106 = arith.mulf %105, %93 : vector<8x16xf32>
    %107 = arith.addf %104, %106 : vector<8x16xf32>
    %108 = arith.truncf %107 : vector<8x16xf32> to vector<8x16xbf16>
    %c0_67 = arith.constant 0 : index
    %c0_68 = arith.constant 0 : index
    %c0_69 = arith.constant 0 : index
    %109 = vector.load %arg10[%c0_67, %c0_68, %c0_69] : memref<1x8x32xbf16, #tpu.memory_space<vmem>>, vector<1x8x16xbf16>
    %110 = vector.shape_cast %109 : vector<1x8x16xbf16> to vector<8x16xbf16>
    %111 = vector.shape_cast %108 : vector<8x16xbf16> to vector<1x8x16xbf16>
    tpu.vector_store %arg10[%c0_67, %c0_68, %c0_69], %111 {strides = array<i32>} : memref<1x8x32xbf16, #tpu.memory_space<vmem>>, vector<1x8x16xbf16>,
    %cst_70 = arith.constant 7.500000e-01 : f32
    %112 = vector.broadcast %cst_70 : f32 to vector<8x16xf32>
    %113 = arith.mulf %112, %93 : vector<8x16xf32>
    %cst_71 = arith.constant 2.500000e-01 : f32
    %114 = vector.broadcast %cst_71 : f32 to vector<8x16xf32>
    %115 = arith.mulf %114, %102 : vector<8x16xf32>
    %116 = arith.addf %113, %115 : vector<8x16xf32>
    %117 = arith.truncf %116 : vector<8x16xf32> to vector<8x16xbf16>
    %c0_72 = arith.constant 0 : index
    %c0_73 = arith.constant 0 : index
    %c16 = arith.constant 16 : index
    %118 = vector.load %arg10[%c0_72, %c0_73, %c16] : memref<1x8x32xbf16, #tpu.memory_space<vmem>>, vector<1x8x16xbf16>
    %119 = vector.shape_cast %118 : vector<1x8x16xbf16> to vector<8x16xbf16>
    %120 = vector.shape_cast %117 : vector<8x16xbf16> to vector<1x8x16xbf16>
    tpu.vector_store %arg10[%c0_72, %c0_73, %c16], %120 {strides = array<i32>} : memref<1x8x32xbf16, #tpu.memory_space<vmem>>, vector<1x8x16xbf16>,
    return
  }
  func.func @transform_0(%arg0: i32) -> (i32, i32, i32) {
    %c0_i32 = arith.constant 0 : i32
    %c0_i32_0 = arith.constant 0 : i32
    %c0_i32_1 = arith.constant 0 : i32
    return %arg0, %c0_i32, %c0_i32_0 : i32, i32, i32
  }
  func.func @transform_1(%arg0: i32) -> (i32, i32, i32) {
    %c0_i32 = arith.constant 0 : i32
    %c0_i32_0 = arith.constant 0 : i32
    %c0_i32_1 = arith.constant 0 : i32
    return %arg0, %c0_i32, %c0_i32_0 : i32, i32, i32
  }
  func.func @transform_2(%arg0: i32) -> (i32, i32, i32) {
    %c0_i32 = arith.constant 0 : i32
    %c0_i32_0 = arith.constant 0 : i32
    %c0_i32_1 = arith.constant 0 : i32
    return %arg0, %c0_i32, %c0_i32_0 : i32, i32, i32
  }
  func.func @transform_3(%arg0: i32) -> (i32, i32, i32) {
    %c0_i32 = arith.constant 0 : i32
    %c0_i32_0 = arith.constant 0 : i32
    %c0_i32_1 = arith.constant 0 : i32
    %c0_i32_2 = arith.constant 0 : i32
    return %c0_i32, %c0_i32_0, %c0_i32_1 : i32, i32, i32
  }
  func.func @transform_4(%arg0: i32) -> (i32, i32, i32) {
    %c0_i32 = arith.constant 0 : i32
    %c0_i32_0 = arith.constant 0 : i32
    %c0_i32_1 = arith.constant 0 : i32
    %c0_i32_2 = arith.constant 0 : i32
    return %c0_i32, %c0_i32_0, %c0_i32_1 : i32, i32, i32
  }
  func.func @transform_5(%arg0: i32) -> (i32, i32) {
    %c0_i32 = arith.constant 0 : i32
    %c0_i32_0 = arith.constant 0 : i32
    %c0_i32_1 = arith.constant 0 : i32
    return %c0_i32, %c0_i32_0 : i32, i32
  }
  func.func @transform_6(%arg0: i32) -> (i32, i32) {
    %c0_i32 = arith.constant 0 : i32
    %c0_i32_0 = arith.constant 0 : i32
    %c0_i32_1 = arith.constant 0 : i32
    return %c0_i32, %c0_i32_0 : i32, i32
  }
  func.func @transform_7(%arg0: i32) -> (i32, i32, i32) {
    %c0_i32 = arith.constant 0 : i32
    %c0_i32_0 = arith.constant 0 : i32
    %c0_i32_1 = arith.constant 0 : i32
    %c0_i32_2 = arith.constant 0 : i32
    return %c0_i32, %c0_i32_0, %c0_i32_1 : i32, i32, i32
  }
  func.func @transform_8(%arg0: i32) -> (i32, i32) {
    %c0_i32 = arith.constant 0 : i32
    %c0_i32_0 = arith.constant 0 : i32
    %c0_i32_1 = arith.constant 0 : i32
    return %c0_i32, %c0_i32_0 : i32, i32
  }
  func.func @transform_9(%arg0: i32) -> (i32, i32, i32) {
    %c0_i32 = arith.constant 0 : i32
    %c0_i32_0 = arith.constant 0 : i32
    %c0_i32_1 = arith.constant 0 : i32
    return %arg0, %c0_i32, %c0_i32_0 : i32, i32, i32
  }
}

</mosaic_0001>

<llo_original>
// kernel: tpu_custom_call.1
$region0: #{tpu_custom_call.1}
  #allocation0 [shape = 'u32[]', space=smem, size = 0x4, offset = 0x4, fixed_abs, tag = 'smem constant byte address 0x4 - core index']
  #allocation1 [shape = 'u32[72,128]{1,0:T(1,128)}', space=vmem, size = 0x9000, scoped, tag = 'internal scratch']
  %s0 = inlined_call_operand.vmem [shape: bf16[2,8,32], index: 0, kind: input, shape index: {}]
  %s1 = inlined_call_operand.vmem [shape: bf16[2,8,32], index: 1, kind: input, shape index: {}]
  %s2 = inlined_call_operand.vmem [shape: f32[2,1,32], index: 2, kind: input, shape index: {}]
  %s3 = inlined_call_operand.vmem [shape: bf16[3,32,32], index: 3, kind: input, shape index: {}]
  %s4 = inlined_call_operand.hbm [shape: bf16[3,32,32], index: 4, kind: input, shape index: {}]
  %s5 = inlined_call_operand.vmem [shape: bf16[32,16], index: 5, kind: input, shape index: {}]
  %s6 = inlined_call_operand.vmem [shape: bf16[32,16], index: 6, kind: input, shape index: {}]
  %s7 = inlined_call_operand.vmem [shape: bf16[3,32,16], index: 7, kind: input, shape index: {}]
  %s8 = inlined_call_operand.vmem [shape: f32[1,16], index: 8, kind: input, shape index: {}]
  %s9 = inlined_call_operand.hbm [shape: bf16[2,8,32], index: 9, kind: output, shape index: {}]
  %s10 = sld [smem:[#allocation0]]
  $region73: #{tpu_custom_call.1} parent=0
    _
  %s12 = ssub.s32 1, %s10
  %s13 = scalar_select 0, %s12, %s10
  $region1: #{tpu_custom_call.1} parent=0
    #allocation2 [shape = 'u8[24576]{0}', space=vmem, size = 0x6000, scoped, tag = 'input window, operand 4, single buffered']
    #allocation3 [shape = 's32[2]{0}', space=sflag, size = 0x8, scoped, tag = 'scoped memory for tpu_custom_call.1']
    #allocation4 [shape = 's32[2]{0}', space=sflag, size = 0x8, scoped, tag = 'scoped memory for tpu_custom_call.1']
    #allocation5 [shape = 'u8[4096]{0}', space=vmem, size = 0x1000, scoped, tag = 'output window, operand 0']
    %14 = vsyncpa [#allocation3], 0
    %15 = vsyncpa [#allocation4], 0
    %s16 = scalar_lea.sflag [#allocation4], 1
    %17 = vsyncpa %s16, 0
    loop: start=0, step=1, limit=4
    $region2: #{tpu_custom_call.1} parent=1 // loop_pre_header
      _
    $region3: #{tpu_custom_call.1} parent=1 // loop_header
      %s19 = sphi 0, %s23
      %p20 = scmp.ge.s32.totalorder %s19, 4
      %s29 = sphi 0, %s31
      %s32 = sphi 0, %s29
      %s33 = sphi 0, %s32
      %s49 = sphi 0, %s33
      %s55 = sphi 0, %s57
      %s58 = sphi 0, %s55
      %s59 = sphi 0, %s58
      %s75 = sphi 0, %s59
      %s81 = sphi 0, %s83
      %s84 = sphi 0, %s81
      %s85 = sphi 0, %s84
      %s101 = sphi 0, %s85
      %s105 = sphi 0, %s105
      %s107 = sphi 0, %s105
      %s108 = sphi 0, %s107
      %s122 = sphi 0, %s108
      %s126 = sphi 0, %s126
      %s128 = sphi 0, %s126
      %s129 = sphi 0, %s128
      %s143 = sphi 0, %s129
      %s147 = sphi 0, %s147
      %s149 = sphi 0, %s147
      %s150 = sphi 0, %s149
      %s164 = sphi 0, %s150
      %s168 = sphi 0, %s168
      %s170 = sphi 0, %s168
      %s171 = sphi 0, %s170
      %s185 = sphi 0, %s171
      %s189 = sphi 0, %s189
      %s191 = sphi 0, %s189
      %s192 = sphi 0, %s191
      %s206 = sphi 0, %s192
      %s210 = sphi 0, %s210
      %s212 = sphi 0, %s210
      %s213 = sphi 0, %s212
      %s227 = sphi 0, %s213
      %s233 = sphi 0, %s235
      %s236 = sphi 0, %s233
      %s237 = sphi 0, %s236
      %s253 = sphi 0, %s237
    $region4: #{tpu_custom_call.1} parent=1 // loop_header_branch
      %22 = sbr.rel (%p20) target = $region8
    $region5: #{tpu_custom_call.1} parent=1 // loop_body
      %s24 = ssub.s32 %s19, 1
      %s25 = ssub.s32 %s19, 2
      %s26 = sadd.s32 %s19, 1
      %s27 = ssub.s32 %s19, %s26
      %p28 = scmp.eq.s32.totalorder %s27, 0
      %s30 = sadd.s32 %s29, 1
      %s31 = scalar_select %p28, %s29, %s30
      %p34 = pneg %p28
      %p35 = scmp.eq.s32.totalorder %s19, 1
      %p36 = por %p34, %p35
      %p37 = scmp.ne.s32.totalorder %s29, %s32
      %p38 = scmp.eq.s32.totalorder %s19, 0
      %p39 = por %p37, %p38
      %p40 = scmp.ne.s32.totalorder %s29, %s32
      %p41 = scmp.eq.s32.totalorder %s24, 1
      %p42 = por %p40, %p41
      %p43 = scmp.ne.s32.totalorder %s32, %s33
      %p44 = scmp.eq.s32.totalorder %s24, 0
      %p45 = por %p43, %p44
      %p46 = scmp.ne.s32.totalorder %s32, %s33
      %p47 = scmp.eq.s32.totalorder %s25, 1
      %p48 = por %p46, %p47
      %p50 = scmp.ne.s32.totalorder %s33, %s49
      %p51 = scmp.eq.s32.totalorder %s25, 0
      %p52 = por %p50, %p51
      %s53 = ssub.s32 %s19, %s26
      %p54 = scmp.eq.s32.totalorder %s53, 0
      %s56 = sadd.s32 %s55, 1
      %s57 = scalar_select %p54, %s55, %s56
      %p60 = pneg %p54
      %p61 = scmp.eq.s32.totalorder %s19, 1
      %p62 = por %p60, %p61
      %p63 = scmp.ne.s32.totalorder %s55, %s58
      %p64 = scmp.eq.s32.totalorder %s19, 0
      %p65 = por %p63, %p64
      %p66 = scmp.ne.s32.totalorder %s55, %s58
      %p67 = scmp.eq.s32.totalorder %s24, 1
      %p68 = por %p66, %p67
      %p69 = scmp.ne.s32.totalorder %s58, %s59
      %p70 = scmp.eq.s32.totalorder %s24, 0
      %p71 = por %p69, %p70
      %p72 = scmp.ne.s32.totalorder %s58, %s59
      %p73 = scmp.eq.s32.totalorder %s25, 1
      %p74 = por %p72, %p73
      %p76 = scmp.ne.s32.totalorder %s59, %s75
      %p77 = scmp.eq.s32.totalorder %s25, 0
      %p78 = por %p76, %p77
      %s79 = ssub.s32 %s19, %s26
      %p80 = scmp.eq.s32.totalorder %s79, 0
      %s82 = sadd.s32 %s81, 1
      %s83 = scalar_select %p80, %s81, %s82
      %p86 = pneg %p80
      %p87 = scmp.eq.s32.totalorder %s19, 1
      %p88 = por %p86, %p87
      %p89 = scmp.ne.s32.totalorder %s81, %s84
      %p90 = scmp.eq.s32.totalorder %s19, 0
      %p91 = por %p89, %p90
      %p92 = scmp.ne.s32.totalorder %s81, %s84
      %p93 = scmp.eq.s32.totalorder %s24, 1
      %p94 = por %p92, %p93
      %p95 = scmp.ne.s32.totalorder %s84, %s85
      %p96 = scmp.eq.s32.totalorder %s24, 0
      %p97 = por %p95, %p96
      %p98 = scmp.ne.s32.totalorder %s84, %s85
      %p99 = scmp.eq.s32.totalorder %s25, 1
      %p100 = por %p98, %p99
      %p102 = scmp.ne.s32.totalorder %s85, %s101
      %p103 = scmp.eq.s32.totalorder %s25, 0
      %p104 = por %p102, %p103
      %s106 = sadd.s32 %s105, 1
      %p109 = scmp.eq.s32.totalorder %s19, 1
      %p110 = scmp.ne.s32.totalorder %s105, %s107
      %p111 = scmp.eq.s32.totalorder %s19, 0
      %p112 = por %p110, %p111
      %p113 = scmp.ne.s32.totalorder %s105, %s107
      %p114 = scmp.eq.s32.totalorder %s24, 1
      %p115 = por %p113, %p114
      %p116 = scmp.ne.s32.totalorder %s107, %s108
      %p117 = scmp.eq.s32.totalorder %s24, 0
      %p118 = por %p116, %p117
      %p119 = scmp.ne.s32.totalorder %s107, %s108
      %p120 = scmp.eq.s32.totalorder %s25, 1
      %p121 = por %p119, %p120
      %p123 = scmp.ne.s32.totalorder %s108, %s122
      %p124 = scmp.eq.s32.totalorder %s25, 0
      %p125 = por %p123, %p124
      %s127 = sadd.s32 %s126, 1
      %p130 = scmp.eq.s32.totalorder %s19, 1
      %p131 = scmp.ne.s32.totalorder %s126, %s128
      %p132 = scmp.eq.s32.totalorder %s19, 0
      %p133 = por %p131, %p132
      %p134 = scmp.ne.s32.totalorder %s126, %s128
      %p135 = scmp.eq.s32.totalorder %s24, 1
      %p136 = por %p134, %p135
      %p137 = scmp.ne.s32.totalorder %s128, %s129
      %p138 = scmp.eq.s32.totalorder %s24, 0
      %p139 = por %p137, %p138
      %p140 = scmp.ne.s32.totalorder %s128, %s129
      %p141 = scmp.eq.s32.totalorder %s25, 1
      %p142 = por %p140, %p141
      %p144 = scmp.ne.s32.totalorder %s129, %s143
      %p145 = scmp.eq.s32.totalorder %s25, 0
      %p146 = por %p144, %p145
      %s148 = sadd.s32 %s147, 1
      %p151 = scmp.eq.s32.totalorder %s19, 1
      %p152 = scmp.ne.s32.totalorder %s147, %s149
      %p153 = scmp.eq.s32.totalorder %s19, 0
      %p154 = por %p152, %p153
      %p155 = scmp.ne.s32.totalorder %s147, %s149
      %p156 = scmp.eq.s32.totalorder %s24, 1
      %p157 = por %p155, %p156
      %p158 = scmp.ne.s32.totalorder %s149, %s150
      %p159 = scmp.eq.s32.totalorder %s24, 0
      %p160 = por %p158, %p159
      %p161 = scmp.ne.s32.totalorder %s149, %s150
      %p162 = scmp.eq.s32.totalorder %s25, 1
      %p163 = por %p161, %p162
      %p165 = scmp.ne.s32.totalorder %s150, %s164
      %p166 = scmp.eq.s32.totalorder %s25, 0
      %p167 = por %p165, %p166
      %s169 = sadd.s32 %s168, 1
      %p172 = scmp.eq.s32.totalorder %s19, 1
      %p173 = scmp.ne.s32.totalorder %s168, %s170
      %p174 = scmp.eq.s32.totalorder %s19, 0
      %p175 = por %p173, %p174
      %p176 = scmp.ne.s32.totalorder %s168, %s170
      %p177 = scmp.eq.s32.totalorder %s24, 1
      %p178 = por %p176, %p177
      %p179 = scmp.ne.s32.totalorder %s170, %s171
      %p180 = scmp.eq.s32.totalorder %s24, 0
      %p181 = por %p179, %p180
      %p182 = scmp.ne.s32.totalorder %s170, %s171
      %p183 = scmp.eq.s32.totalorder %s25, 1
      %p184 = por %p182, %p183
      %p186 = scmp.ne.s32.totalorder %s171, %s185
      %p187 = scmp.eq.s32.totalorder %s25, 0
      %p188 = por %p186, %p187
      %s190 = sadd.s32 %s189, 1
      %p193 = scmp.eq.s32.totalorder %s19, 1
      %p194 = scmp.ne.s32.totalorder %s189, %s191
      %p195 = scmp.eq.s32.totalorder %s19, 0
      %p196 = por %p194, %p195
      %p197 = scmp.ne.s32.totalorder %s189, %s191
      %p198 = scmp.eq.s32.totalorder %s24, 1
      %p199 = por %p197, %p198
      %p200 = scmp.ne.s32.totalorder %s191, %s192
      %p201 = scmp.eq.s32.totalorder %s24, 0
      %p202 = por %p200, %p201
      %p203 = scmp.ne.s32.totalorder %s191, %s192
      %p204 = scmp.eq.s32.totalorder %s25, 1
      %p205 = por %p203, %p204
      %p207 = scmp.ne.s32.totalorder %s192, %s206
      %p208 = scmp.eq.s32.totalorder %s25, 0
      %p209 = por %p207, %p208
      %s211 = sadd.s32 %s210, 1
      %p214 = scmp.eq.s32.totalorder %s19, 1
      %p215 = scmp.ne.s32.totalorder %s210, %s212
      %p216 = scmp.eq.s32.totalorder %s19, 0
      %p217 = por %p215, %p216
      %p218 = scmp.ne.s32.totalorder %s210, %s212
      %p219 = scmp.eq.s32.totalorder %s24, 1
      %p220 = por %p218, %p219
      %p221 = scmp.ne.s32.totalorder %s212, %s213
      %p222 = scmp.eq.s32.totalorder %s24, 0
      %p223 = por %p221, %p222
      %p224 = scmp.ne.s32.totalorder %s212, %s213
      %p225 = scmp.eq.s32.totalorder %s25, 1
      %p226 = por %p224, %p225
      %p228 = scmp.ne.s32.totalorder %s213, %s227
      %p229 = scmp.eq.s32.totalorder %s25, 0
      %p230 = por %p228, %p229
      %s231 = ssub.s32 %s19, %s26
      %p232 = scmp.eq.s32.totalorder %s231, 0
      %s234 = sadd.s32 %s233, 1
      %s235 = scalar_select %p232, %s233, %s234
      %p238 = pneg %p232
      %p239 = scmp.eq.s32.totalorder %s19, 1
      %p240 = por %p238, %p239
      %p241 = scmp.ne.s32.totalorder %s233, %s236
      %p242 = scmp.eq.s32.totalorder %s19, 0
      %p243 = por %p241, %p242
      %p244 = scmp.ne.s32.totalorder %s233, %s236
      %p245 = scmp.eq.s32.totalorder %s24, 1
      %p246 = por %p244, %p245
      %p247 = scmp.ne.s32.totalorder %s236, %s237
      %p248 = scmp.eq.s32.totalorder %s24, 0
      %p249 = por %p247, %p248
      %p250 = scmp.ne.s32.totalorder %s236, %s237
      %p251 = scmp.eq.s32.totalorder %s25, 1
      %p252 = por %p250, %p251
      %p254 = scmp.ne.s32.totalorder %s237, %s253
      %p255 = scmp.eq.s32.totalorder %s25, 0
      %p256 = por %p254, %p255
      %p257 = scmp.le.s32.totalorder 1, %s19
      %p258 = scmp.lt.s32.totalorder %s19, 3
      %p259 = pnand %p257, %p258
      %p260 = pneg %p259
      // Predicated region
      $region9: #{tpu_custom_call.1} parent=5 // pred_check
        _
      $region10: #{tpu_custom_call.1} parent=5 // pred_check_branch
        %262 = sbr.rel (%p259) target = $region12
      $region11: #{tpu_custom_call.1} parent=5 // pred_region
        %s263 = ssub.s32 %s19, 1
        // Predicated region
        $region13: #{tpu_custom_call.1} parent=11 // pred_check
          %p264 = pneg %p118
        $region14: #{tpu_custom_call.1} parent=11 // pred_check_branch
          %266 = sbr.rel (%p264) target = $region16
        $region15: #{tpu_custom_call.1} parent=11 // pred_region
          _
        $region16: #{tpu_custom_call.1} parent=11 // pred_fallthru
          _
        // Predicated region
        $region17: #{tpu_custom_call.1} parent=11 // pred_check
          %p267 = pneg %p139
        $region18: #{tpu_custom_call.1} parent=11 // pred_check_branch
          %269 = sbr.rel (%p267) target = $region20
        $region19: #{tpu_custom_call.1} parent=11 // pred_region
          %271 = vsyncadd [#allocation3], 0
          %s272 = sshll.u32 %s4, 4
          %s273 = int_to_ptr.hbm [resolvable:$true] %s272
          %s274 = sshll.u32 [#allocation2], 4
          %s275 = int_to_ptr.vmem [resolvable:$true] %s274
          %280 = dma.hbm_to_vmem [thread:$0]  %s273, 768, %s275, [#allocation3], 64, 64, 4
        $region20: #{tpu_custom_call.1} parent=11 // pred_fallthru
          _
        // Predicated region
        $region21: #{tpu_custom_call.1} parent=11 // pred_check
          %p281 = pneg %p160
        $region22: #{tpu_custom_call.1} parent=11 // pred_check_branch
          %283 = sbr.rel (%p281) target = $region24
        $region23: #{tpu_custom_call.1} parent=11 // pred_region
          _
        $region24: #{tpu_custom_call.1} parent=11 // pred_fallthru
          _
        // Predicated region
        $region25: #{tpu_custom_call.1} parent=11 // pred_check
          %p284 = pneg %p181
        $region26: #{tpu_custom_call.1} parent=11 // pred_check_branch
          %286 = sbr.rel (%p284) target = $region28
        $region27: #{tpu_custom_call.1} parent=11 // pred_region
          _
        $region28: #{tpu_custom_call.1} parent=11 // pred_fallthru
          _
        // Predicated region
        $region29: #{tpu_custom_call.1} parent=11 // pred_check
          %p287 = pneg %p202
        $region30: #{tpu_custom_call.1} parent=11 // pred_check_branch
          %289 = sbr.rel (%p287) target = $region32
        $region31: #{tpu_custom_call.1} parent=11 // pred_region
          _
        $region32: #{tpu_custom_call.1} parent=11 // pred_fallthru
          _
        // Predicated region
        $region33: #{tpu_custom_call.1} parent=11 // pred_check
          %p290 = pneg %p223
        $region34: #{tpu_custom_call.1} parent=11 // pred_check_branch
          %292 = sbr.rel (%p290) target = $region36
        $region35: #{tpu_custom_call.1} parent=11 // pred_region
          _
        $region36: #{tpu_custom_call.1} parent=11 // pred_fallthru
          _
      $region12: #{tpu_custom_call.1} parent=5 // pred_fallthru
        _
      %p293 = scmp.lt.s32.totalorder %s19, 2
      // Predicated region
      $region37: #{tpu_custom_call.1} parent=5 // pred_check
        %p294 = pneg %p293
      $region38: #{tpu_custom_call.1} parent=5 // pred_check_branch
        %296 = sbr.rel (%p294) target = $region40
      $region39: #{tpu_custom_call.1} parent=5 // pred_region
        // Predicated region
        $region41: #{tpu_custom_call.1} parent=39 // pred_check
          %p297 = pneg %p39
        $region42: #{tpu_custom_call.1} parent=39 // pred_check_branch
          %299 = sbr.rel (%p297) target = $region44
        $region43: #{tpu_custom_call.1} parent=39 // pred_region
          %p300 = scmp.lt.s32.totalorder %s19, 1
          %s301 = scalar_select %p300, %s19, 1
          %s302 = smul.addr %s301, 4
          %s303 = scalar_lea.vmem %s0, %s302
        $region44: #{tpu_custom_call.1} parent=39 // pred_fallthru
          _
        // Predicated region
        $region45: #{tpu_custom_call.1} parent=39 // pred_check
          %p304 = pneg %p65
        $region46: #{tpu_custom_call.1} parent=39 // pred_check_branch
          %306 = sbr.rel (%p304) target = $region48
        $region47: #{tpu_custom_call.1} parent=39 // pred_region
          %p307 = scmp.lt.s32.totalorder %s19, 1
          %s308 = scalar_select %p307, %s19, 1
          %s309 = smul.addr %s308, 4
          %s310 = scalar_lea.vmem %s1, %s309
        $region48: #{tpu_custom_call.1} parent=39 // pred_fallthru
          _
        // Predicated region
        $region49: #{tpu_custom_call.1} parent=39 // pred_check
          %p311 = pneg %p91
        $region50: #{tpu_custom_call.1} parent=39 // pred_check_branch
          %313 = sbr.rel (%p311) target = $region52
        $region51: #{tpu_custom_call.1} parent=39 // pred_region
          %p314 = scmp.lt.s32.totalorder %s19, 1
          %s315 = scalar_select %p314, %s19, 1
          %s316 = scalar_lea.vmem %s2, %s315
        $region52: #{tpu_custom_call.1} parent=39 // pred_fallthru
          _
      $region40: #{tpu_custom_call.1} parent=5 // pred_fallthru
        _
      %p317 = scmp.le.s32.totalorder 1, %s19
      %p318 = scmp.lt.s32.totalorder %s19, 3
      %p319 = pnand %p317, %p318
      %p320 = pneg %p319
      // Predicated region
      $region53: #{tpu_custom_call.1} parent=5 // pred_check
        _
      $region54: #{tpu_custom_call.1} parent=5 // pred_check_branch
        %322 = sbr.rel (%p319) target = $region56
      $region55: #{tpu_custom_call.1} parent=5 // pred_region
        %s323 = ssub.s32 %s19, 1
        // Predicated region
        $region57: #{tpu_custom_call.1} parent=55 // pred_check
          %p324 = pneg %p139
        $region58: #{tpu_custom_call.1} parent=55 // pred_check_branch
          %326 = sbr.rel (%p324) target = $region60
        $region59: #{tpu_custom_call.1} parent=55 // pred_region
          %328 = dma.done [#allocation3], 768
        $region60: #{tpu_custom_call.1} parent=55 // pred_fallthru
          _
        %p329 = scmp.lt.s32.totalorder %s24, 1
        %s330 = scalar_select %p329, %s24, 1
        %s331 = smul.addr %s330, 4
        %s332 = scalar_lea.vmem %s0, %s331
        %p333 = pneg %p45
        %p334 = pneg %p42
        %p335 = scmp.lt.s32.totalorder %s24, 1
        %s336 = scalar_select %p335, %s24, 1
        %s337 = smul.addr %s336, 4
        %s338 = scalar_lea.vmem %s1, %s337
        %p339 = pneg %p71
        %p340 = pneg %p68
        %p341 = scmp.lt.s32.totalorder %s24, 1
        %s342 = scalar_select %p341, %s24, 1
        %s343 = scalar_lea.vmem %s2, %s342
        %p344 = pneg %p97
        %p345 = pneg %p94
        %p346 = pneg %p118
        %p347 = pneg %p115
        %p348 = pneg %p139
        %p349 = pneg %p136
        %p350 = pneg %p160
        %p351 = pneg %p157
        %p352 = pneg %p181
        %p353 = pneg %p178
        %p354 = pneg %p202
        %p355 = pneg %p199
        %p356 = pneg %p223
        %p357 = pneg %p220
        %p358 = pneg %p249
        %p359 = pneg %p246
        %s360 = sand.u32 %s236, 1
        %s361 = scalar_lea.sflag [#allocation4], %s360
        %s362 = sand.u32 %s236, 1
        %s363 = smul.addr %s362, 4
        %s364 = scalar_lea.vmem [#allocation5], %s363
        %p365 = scmp.lt.s32.totalorder %s24, 1
        %s366 = scalar_select %p365, %s24, 1
        %s367 = smul.addr %s366, 4
        %s368 = scalar_lea.vmem %s0, %s367
        %p369 = scmp.lt.s32.totalorder %s24, 1
        %s370 = scalar_select %p369, %s24, 1
        %s371 = smul.addr %s370, 4
        %s372 = scalar_lea.vmem %s1, %s371
        %p373 = scmp.lt.s32.totalorder %s24, 1
        %s374 = scalar_select %p373, %s24, 1
        %s375 = scalar_lea.vmem %s2, %s374
        %v377 = vld [vmem:[%s368] sm:$0xf]
        %v378 = vld [vmem:[%s372] sm:$0xf]
        %v379 = vld [vmem:[%s375] sm:$0x1]
        %v380 = vld [vmem:[%s3] sm:$0xf]
        %v381 = vld [vmem:[%s3 + $0x4] sm:$0xf]
        %v382 = vld [vmem:[%s3 + $0x8] sm:$0xf]
        %v383 = vld [vmem:[%s3 + $0xc] sm:$0xf]
        %v384 = vld [vmem:[#allocation2] sm:$0xf]
        %v385 = vld [vmem:[#allocation2 + $0x4] sm:$0xf]
        %v386 = vld [vmem:[#allocation2 + $0x8] sm:$0xf]
        %v387 = vld [vmem:[#allocation2 + $0xc] sm:$0xf]
        %v392 = vunpack.c.l.b16 %v384
        %v393 = vunpack.c.l.b16 %v385
        %v394 = vunpack.c.l.b16 %v386
        %v395 = vunpack.c.l.b16 %v387
        %v396 = vpack.c.b16 %v393, %v392
        %v397 = vpack.c.b16 %v395, %v394
        %vm400 = vcmask 261120
        %v402 = vsel %vm400, %v378, 0
        %404 = vmatpush.bf16.msra.mxu0 0
        %405 = vmatpush.bf16.msra.mxu0 0
        %406 = vmatpush.bf16.msra.mxu0 0
        %407 = vmatpush.bf16.msra.mxu0 0
        %408 = vmatpush.bf16.msra.mxu0 0
        %409 = vmatpush.bf16.msra.mxu0 0
        %410 = vmatpush.bf16.msra.mxu0 %v397
        %411 = vmatpush.bf16.msra.mxu0 %v396
        %412 = vmatmul.bf16.gmra.mxu0 %v402
        %v413 = vpop.f32.mrf.mxu0
        %v414 = vadd.f32 0.0, %v413
        %v415 = vpop.f32.mrf.mxu0
        %416 = vdwg.mxu0
        %v421 = vunpack.c.l.b16 %v380
        %v422 = vunpack.c.l.b16 %v381
        %v423 = vunpack.c.l.b16 %v382
        %v424 = vunpack.c.l.b16 %v383
        %v425 = vpack.c.b16 %v422, %v421
        %v426 = vpack.c.b16 %v424, %v423
        %v430 = vsel %vm400, %v377, 0
        %432 = vmatpush.bf16.msra.mxu0 0
        %433 = vmatpush.bf16.msra.mxu0 0
        %434 = vmatpush.bf16.msra.mxu0 0
        %435 = vmatpush.bf16.msra.mxu0 0
        %436 = vmatpush.bf16.msra.mxu0 0
        %437 = vmatpush.bf16.msra.mxu0 0
        %438 = vmatpush.bf16.msra.mxu0 %v426
        %439 = vmatpush.bf16.msra.mxu0 %v425
        %440 = vmatmul.bf16.gmra.mxu0 %v430
        %v441 = vpop.f32.mrf.mxu0
        %v442 = vadd.f32 %v414, %v441
        %v443 = vpop.f32.mrf.mxu0
        %444 = vdwg.mxu0
        %v445 = vrot.slane %v442, 6
        %v446 = vlaneseq
        %v447 = vshrl.u32 %v446, 7
        %vm448 = vcmp.ge.s32.totalorder %v447, 2
        %vm449 = vcmp.lt.s32.totalorder %v447, 10
        %vm450 = vmand %vm448, %vm449
        %v451 = vsel %vm450, %v445, 0.0
        %v453 = vperm.slane %v379, 0
        %v455 = vadd.f32 %v453, %v451
        %s456 = scalar_lea.vmem %s3, 16
        %v457 = vld [vmem:[%s456] sm:$0xf]
        %v458 = vld [vmem:[%s456 + $0x4] sm:$0xf]
        %v459 = vld [vmem:[%s456 + $0x8] sm:$0xf]
        %v460 = vld [vmem:[%s456 + $0xc] sm:$0xf]
        %s461 = scalar_lea.vmem [#allocation2], 16
        %v462 = vld [vmem:[%s461] sm:$0xf]
        %v463 = vld [vmem:[%s461 + $0x4] sm:$0xf]
        %v464 = vld [vmem:[%s461 + $0x8] sm:$0xf]
        %v465 = vld [vmem:[%s461 + $0xc] sm:$0xf]
        %v470 = vunpack.c.l.b16 %v462
        %v471 = vunpack.c.l.b16 %v463
        %v472 = vunpack.c.l.b16 %v464
        %v473 = vunpack.c.l.b16 %v465
        %v474 = vpack.c.b16 %v471, %v470
        %v475 = vpack.c.b16 %v473, %v472
        %478 = vmatpush.bf16.msra.mxu0 0
        %479 = vmatpush.bf16.msra.mxu0 0
        %480 = vmatpush.bf16.msra.mxu0 0
        %481 = vmatpush.bf16.msra.mxu0 0
        %482 = vmatpush.bf16.msra.mxu0 0
        %483 = vmatpush.bf16.msra.mxu0 0
        %484 = vmatpush.bf16.msra.mxu0 %v475
        %485 = vmatpush.bf16.msra.mxu0 %v474
        %486 = vmatmul.bf16.gmra.mxu0 %v402
        %v487 = vpop.f32.mrf.mxu0
        %v488 = vadd.f32 0.0, %v487
        %v489 = vpop.f32.mrf.mxu0
        %490 = vdwg.mxu0
        %v495 = vunpack.c.l.b16 %v457
        %v496 = vunpack.c.l.b16 %v458
        %v497 = vunpack.c.l.b16 %v459
        %v498 = vunpack.c.l.b16 %v460
        %v499 = vpack.c.b16 %v496, %v495
        %v500 = vpack.c.b16 %v498, %v497
        %503 = vmatpush.bf16.msra.mxu0 0
        %504 = vmatpush.bf16.msra.mxu0 0
        %505 = vmatpush.bf16.msra.mxu0 0
        %506 = vmatpush.bf16.msra.mxu0 0
        %507 = vmatpush.bf16.msra.mxu0 0
        %508 = vmatpush.bf16.msra.mxu0 0
        %509 = vmatpush.bf16.msra.mxu0 %v500
        %510 = vmatpush.bf16.msra.mxu0 %v499
        %511 = vmatmul.bf16.gmra.mxu0 %v430
        %v512 = vpop.f32.mrf.mxu0
        %v513 = vadd.f32 %v488, %v512
        %v514 = vpop.f32.mrf.mxu0
        %515 = vdwg.mxu0
        %v516 = vrot.slane %v513, 7
        %vm517 = vcmp.ge.s32.totalorder %v447, 1
        %vm518 = vcmp.lt.s32.totalorder %v447, 9
        %vm519 = vmand %vm517, %vm518
        %v520 = vsel %vm519, %v516, 0.0
        %v521 = vadd.f32 %v455, %v520
        %s522 = scalar_lea.vmem %s3, 32
        %v523 = vld [vmem:[%s522] sm:$0xf]
        %v524 = vld [vmem:[%s522 + $0x4] sm:$0xf]
        %v525 = vld [vmem:[%s522 + $0x8] sm:$0xf]
        %v526 = vld [vmem:[%s522 + $0xc] sm:$0xf]
        %s527 = scalar_lea.vmem [#allocation2], 32
        %v528 = vld [vmem:[%s527] sm:$0xf]
        %v529 = vld [vmem:[%s527 + $0x4] sm:$0xf]
        %v530 = vld [vmem:[%s527 + $0x8] sm:$0xf]
        %v531 = vld [vmem:[%s527 + $0xc] sm:$0xf]
        %v536 = vunpack.c.l.b16 %v528
        %v537 = vunpack.c.l.b16 %v529
        %v538 = vunpack.c.l.b16 %v530
        %v539 = vunpack.c.l.b16 %v531
        %v540 = vpack.c.b16 %v537, %v536
        %v541 = vpack.c.b16 %v539, %v538
        %544 = vmatpush.bf16.msra.mxu0 0
        %545 = vmatpush.bf16.msra.mxu0 0
        %546 = vmatpush.bf16.msra.mxu0 0
        %547 = vmatpush.bf16.msra.mxu0 0
        %548 = vmatpush.bf16.msra.mxu0 0
        %549 = vmatpush.bf16.msra.mxu0 0
        %550 = vmatpush.bf16.msra.mxu0 %v541
        %551 = vmatpush.bf16.msra.mxu0 %v540
        %552 = vmatmul.bf16.gmra.mxu0 %v402
        %v553 = vpop.f32.mrf.mxu0
        %v554 = vadd.f32 0.0, %v553
        %v555 = vpop.f32.mrf.mxu0
        %556 = vdwg.mxu0
        %v561 = vunpack.c.l.b16 %v523
        %v562 = vunpack.c.l.b16 %v524
        %v563 = vunpack.c.l.b16 %v525
        %v564 = vunpack.c.l.b16 %v526
        %v565 = vpack.c.b16 %v562, %v561
        %v566 = vpack.c.b16 %v564, %v563
        %569 = vmatpush.bf16.msra.mxu0 0
        %570 = vmatpush.bf16.msra.mxu0 0
        %571 = vmatpush.bf16.msra.mxu0 0
        %572 = vmatpush.bf16.msra.mxu0 0
        %573 = vmatpush.bf16.msra.mxu0 0
        %574 = vmatpush.bf16.msra.mxu0 0
        %575 = vmatpush.bf16.msra.mxu0 %v566
        %576 = vmatpush.bf16.msra.mxu0 %v565
        %577 = vmatmul.bf16.gmra.mxu0 %v430
        %v578 = vpop.f32.mrf.mxu0
        %v579 = vadd.f32 %v554, %v578
        %v580 = vpop.f32.mrf.mxu0
        %581 = vdwg.mxu0
        %v582 = vadd.f32 %v521, %v579
        %v583 = vmax.f32 %v582, 0.0
        %v584 = vld [vmem:[%s8] sm:$0x1]
        %v585 = vld [vmem:[%s5] sm:$0xf]
        %v586 = vld [vmem:[%s5 + $0x4] sm:$0xf]
        %v587 = vld [vmem:[%s5 + $0x8] sm:$0xf]
        %v588 = vld [vmem:[%s5 + $0xc] sm:$0xf]
        %v593 = vunpack.c.l.b16 %v585
        %v594 = vunpack.c.l.b16 %v586
        %v595 = vunpack.c.l.b16 %v587
        %v596 = vunpack.c.l.b16 %v588
        %v597 = vpack.c.b16 %v594, %v593
        %v598 = vpack.c.b16 %v596, %v595
        %601 = vmatpush.bf16.msra.mxu0 0
        %602 = vmatpush.bf16.msra.mxu0 0
        %603 = vmatpush.bf16.msra.mxu0 0
        %604 = vmatpush.bf16.msra.mxu0 0
        %605 = vmatpush.bf16.msra.mxu0 0
        %606 = vmatpush.bf16.msra.mxu0 0
        %607 = vmatpush.bf16.msra.mxu0 %v598
        %608 = vmatpush.bf16.msra.mxu0 %v597
        %609 = vmatmul.bf16.gmra.mxu0 %v430
        %v610 = vpop.f32.mrf.mxu0
        %v611 = vadd.f32 0.0, %v610
        %v612 = vpop.f32.mrf.mxu0
        %613 = vdwg.mxu0
        %v615 = vperm.slane %v584, 0
        %v617 = vadd.f32 %v615, %v611
        %v618 = vld [vmem:[%s6] sm:$0xf]
        %v619 = vld [vmem:[%s6 + $0x4] sm:$0xf]
        %v620 = vld [vmem:[%s6 + $0x8] sm:$0xf]
        %v621 = vld [vmem:[%s6 + $0xc] sm:$0xf]
        %v626 = vunpack.c.l.b16 %v618
        %v627 = vunpack.c.l.b16 %v619
        %v628 = vunpack.c.l.b16 %v620
        %v629 = vunpack.c.l.b16 %v621
        %v630 = vpack.c.b16 %v627, %v626
        %v631 = vpack.c.b16 %v629, %v628
        %634 = vmatpush.bf16.msra.mxu0 0
        %635 = vmatpush.bf16.msra.mxu0 0
        %636 = vmatpush.bf16.msra.mxu0 0
        %637 = vmatpush.bf16.msra.mxu0 0
        %638 = vmatpush.bf16.msra.mxu0 0
        %639 = vmatpush.bf16.msra.mxu0 0
        %640 = vmatpush.bf16.msra.mxu0 %v631
        %641 = vmatpush.bf16.msra.mxu0 %v630
        %642 = vmatmul.bf16.gmra.mxu0 %v402
        %v643 = vpop.f32.mrf.mxu0
        %v644 = vadd.f32 0.0, %v643
        %v645 = vpop.f32.mrf.mxu0
        %646 = vdwg.mxu0
        %v647 = vadd.f32 %v617, %v644
        %v648 = vld [vmem:[%s7] sm:$0xf]
        %v649 = vld [vmem:[%s7 + $0x4] sm:$0xf]
        %v650 = vld [vmem:[%s7 + $0x8] sm:$0xf]
        %v651 = vld [vmem:[%s7 + $0xc] sm:$0xf]
        %v652 = vpack.c.bf16 %v583, %v583
        %v657 = vunpack.c.l.b16 %v648
        %v658 = vunpack.c.l.b16 %v649
        %v659 = vunpack.c.l.b16 %v650
        %v660 = vunpack.c.l.b16 %v651
        %v661 = vpack.c.b16 %v658, %v657
        %v662 = vpack.c.b16 %v660, %v659
        %v666 = vsel %vm400, %v652, 0
        %668 = vmatpush.bf16.msra.mxu0 0
        %669 = vmatpush.bf16.msra.mxu0 0
        %670 = vmatpush.bf16.msra.mxu0 0
        %671 = vmatpush.bf16.msra.mxu0 0
        %672 = vmatpush.bf16.msra.mxu0 0
        %673 = vmatpush.bf16.msra.mxu0 0
        %674 = vmatpush.bf16.msra.mxu0 %v662
        %675 = vmatpush.bf16.msra.mxu0 %v661
        %676 = vmatmul.bf16.gmra.mxu0 %v666
        %v677 = vpop.f32.mrf.mxu0
        %v678 = vadd.f32 0.0, %v677
        %v679 = vpop.f32.mrf.mxu0
        %680 = vdwg.mxu0
        %v681 = vrot.slane %v678, 6
        %v682 = vsel %vm450, %v681, 0.0
        %v683 = vadd.f32 %v647, %v682
        %s684 = scalar_lea.vmem %s7, 16
        %v685 = vld [vmem:[%s684] sm:$0xf]
        %v686 = vld [vmem:[%s684 + $0x4] sm:$0xf]
        %v687 = vld [vmem:[%s684 + $0x8] sm:$0xf]
        %v688 = vld [vmem:[%s684 + $0xc] sm:$0xf]
        %v693 = vunpack.c.l.b16 %v685
        %v694 = vunpack.c.l.b16 %v686
        %v695 = vunpack.c.l.b16 %v687
        %v696 = vunpack.c.l.b16 %v688
        %v697 = vpack.c.b16 %v694, %v693
        %v698 = vpack.c.b16 %v696, %v695
        %701 = vmatpush.bf16.msra.mxu0 0
        %702 = vmatpush.bf16.msra.mxu0 0
        %703 = vmatpush.bf16.msra.mxu0 0
        %704 = vmatpush.bf16.msra.mxu0 0
        %705 = vmatpush.bf16.msra.mxu0 0
        %706 = vmatpush.bf16.msra.mxu0 0
        %707 = vmatpush.bf16.msra.mxu0 %v698
        %708 = vmatpush.bf16.msra.mxu0 %v697
        %709 = vmatmul.bf16.gmra.mxu0 %v666
        %v710 = vpop.f32.mrf.mxu0
        %v711 = vadd.f32 0.0, %v710
        %v712 = vpop.f32.mrf.mxu0
        %713 = vdwg.mxu0
        %v714 = vrot.slane %v711, 7
        %v715 = vsel %vm519, %v714, 0.0
        %v716 = vadd.f32 %v683, %v715
        %s717 = scalar_lea.vmem %s7, 32
        %v718 = vld [vmem:[%s717] sm:$0xf]
        %v719 = vld [vmem:[%s717 + $0x4] sm:$0xf]
        %v720 = vld [vmem:[%s717 + $0x8] sm:$0xf]
        %v721 = vld [vmem:[%s717 + $0xc] sm:$0xf]
        %v726 = vunpack.c.l.b16 %v718
        %v727 = vunpack.c.l.b16 %v719
        %v728 = vunpack.c.l.b16 %v720
        %v729 = vunpack.c.l.b16 %v721
        %v730 = vpack.c.b16 %v727, %v726
        %v731 = vpack.c.b16 %v729, %v728
        %734 = vmatpush.bf16.msra.mxu0 0
        %735 = vmatpush.bf16.msra.mxu0 0
        %736 = vmatpush.bf16.msra.mxu0 0
        %737 = vmatpush.bf16.msra.mxu0 0
        %738 = vmatpush.bf16.msra.mxu0 0
        %739 = vmatpush.bf16.msra.mxu0 0
        %740 = vmatpush.bf16.msra.mxu0 %v731
        %741 = vmatpush.bf16.msra.mxu0 %v730
        %742 = vmatmul.bf16.gmra.mxu0 %v666
        %v743 = vpop.f32.mrf.mxu0
        %v744 = vadd.f32 0.0, %v743
        %v745 = vpop.f32.mrf.mxu0
        %746 = vdwg.mxu0
        %v747 = vadd.f32 %v716, %v744
        %v748 = vmax.f32 %v747, 0.0
        %vm749 = vcmp.eq.s32.totalorder %v447, 0
        %v750 = vrot.slane %v748, 7
        %v751 = vsel %vm749, %v748, %v750
        %vm752 = vcmp.eq.s32.totalorder %v447, 7
        %v753 = vrot.slane %v748, 1
        %v754 = vsel %vm752, %v748, %v753
        %v755 = vmul.f32 %v751, 0.25
        %v756 = vmul.f32 %v748, 0.75
        %v757 = vadd.f32 %v755, %v756
        %v758 = vpack.c.bf16 %v757, %v757
        %vm759 = vcmask 125952
        %760 = vst.msk [vmem:[%s364] sm:$0xf] %vm759, %v758
        %v761 = vmul.f32 %v754, 0.25
        %v762 = vadd.f32 %v756, %v761
        %v763 = vpack.c.bf16 %v762, %v762
        %765 = vrot.lane.b32.xlu0 %v763, 16
        %v766 = vpop.permute.xlu0 %765
        %vm768 = vcmask 257152
        %769 = vst.msk [vmem:[%s364] sm:$0xf] %vm768, %v766
        %s770 = sand.u32 %s236, 1
        %s771 = scalar_lea.sflag [#allocation4], %s770
        %s772 = sand.u32 %s236, 1
        %s773 = smul.addr %s772, 4
        %s774 = scalar_lea.vmem [#allocation5], %s773
        // Predicated region
        $region61: #{tpu_custom_call.1} parent=55 // pred_check
          %p775 = pneg %p246
        $region62: #{tpu_custom_call.1} parent=55 // pred_check_branch
          %777 = sbr.rel (%p775) target = $region64
        $region63: #{tpu_custom_call.1} parent=55 // pred_region
          %779 = vsyncadd %s771, 0
          %s780 = smul.addr %s24, 4
          %s781 = scalar_lea.hbm %s9, %s780
          %s783 = sshll.u32 %s774, 4
          %s784 = int_to_ptr.vmem [resolvable:$true] %s783
          %s785 = sshll.u32 %s781, 4
          %s786 = int_to_ptr.hbm [resolvable:$true] %s785
          %788 = dma.vmem_to_hbm [thread:$0]  %s784, 64, %s786, %s771
        $region64: #{tpu_custom_call.1} parent=55 // pred_fallthru
          _
      $region56: #{tpu_custom_call.1} parent=5 // pred_fallthru
        _
      %p789 = scmp.le.s32.totalorder 2, %s19
      // Predicated region
      $region65: #{tpu_custom_call.1} parent=5 // pred_check
        %p790 = pneg %p789
      $region66: #{tpu_custom_call.1} parent=5 // pred_check_branch
        %792 = sbr.rel (%p790) target = $region68
      $region67: #{tpu_custom_call.1} parent=5 // pred_region
        %s793 = ssub.s32 %s19, 2
        // Predicated region
        $region69: #{tpu_custom_call.1} parent=67 // pred_check
          %p794 = pneg %p252
        $region70: #{tpu_custom_call.1} parent=67 // pred_check_branch
          %796 = sbr.rel (%p794) target = $region72
        $region71: #{tpu_custom_call.1} parent=67 // pred_region
          %s797 = sand.u32 %s237, 1
          %s798 = scalar_lea.sflag [#allocation4], %s797
          %s799 = sand.u32 %s237, 1
          %s800 = smul.addr %s799, 4
          %s801 = scalar_lea.vmem [#allocation5], %s800
          %803 = dma.done %s798, 64
        $region72: #{tpu_custom_call.1} parent=67 // pred_fallthru
          _
      $region68: #{tpu_custom_call.1} parent=5 // pred_fallthru
        _
    $region6: #{tpu_custom_call.1} parent=1 // loop_footer
      %s23 = sadd.s32 1, %s19
    $region7: #{tpu_custom_call.1} parent=1 // loop_footer_branch
      %18 = sbr.rel target = $region3
    $region8: #{tpu_custom_call.1} parent=1 // loop_exit
      _
    %804 = vsyncpa [#allocation3], 1
    %s805 = scalar_lea.sflag [#allocation3], 1
    %806 = vsyncpa %s805, 1
    %807 = vsyncpa [#allocation4], 1
    %s808 = scalar_lea.sflag [#allocation4], 1
    %809 = vsyncpa %s808, 1

</llo_original>
